<compile_context>
chip_gen: v7x
topology: tpu7x:2x2x1
jax: 0.10.0
libtpu: 0.0.40
codegen_flags: <defaults>
</compile_context>

<pallas_src>
import math
import functools

import jax
import jax.numpy as jnp
from jax.experimental import pallas as pl
from jax.experimental.pallas import tpu as pltpu


# ---------------------------------------------------------------------------
# Helpers
# ---------------------------------------------------------------------------
def _round_up(v, m):
    return ((v + m - 1) // m) * m


def _pick_tile(extent, cap, unit):
    """Largest tile that is a multiple of `unit`, divides round_up(extent, unit)
    and is <= cap, so no padding beyond the `unit` alignment is ever needed."""
    extent = _round_up(max(int(extent), 1), unit)
    if extent <= cap:
        return extent
    t = (cap // unit) * unit
    while t > unit:
        if extent % t == 0:
            return t
        t -= unit
    return unit


def _pad2(a, rows, cols):
    r, c = a.shape
    if r == rows and c == cols:
        return a
    return jnp.pad(a, ((0, rows - r), (0, cols - c)))


def _apply_activation(y, activation):
    """Trace-time dispatch; y is an f32 tile inside a kernel."""
    if activation == "none":
        return y
    if activation == "relu":
        return jnp.maximum(y, 0.0)
    if activation == "sigmoid":
        # exp lands on the EUP slot; approx reciprocal also on EUP -> ~free.
        return pl.reciprocal(1.0 + jnp.exp(-y), approx=True)
    if activation == "softplus":
        # Numerically stable softplus: max(x, 0) + log1p(exp(-|x|))
        return jnp.maximum(y, 0.0) + jnp.log1p(jnp.exp(-jnp.abs(y)))
    raise ValueError(f"unknown activation: {activation}")


# ---------------------------------------------------------------------------
# Tiled matmul kernel:  y = act(x @ W + b)   (bias + NB activation + optional
# extra_outputs pass-through fused into the k==last epilogue)
# ---------------------------------------------------------------------------
def _linear_act_kernel(x_ref, w_ref, b_ref, o_ref, *, activation, n_act_cols, tn):
    k = pl.program_id(2)

    @pl.when(k == 0)
    def _():
        o_ref[...] = jnp.zeros_like(o_ref)

    # bf16 operands on the MXU, f32 accumulation directly into the resident
    # f32 output block (no scratch accumulator).
    o_ref[...] += jnp.dot(x_ref[...].astype(jnp.bfloat16),
                          w_ref[...].astype(jnp.bfloat16),
                          preferred_element_type=jnp.float32)

    @pl.when(k == pl.num_programs(2) - 1)
    def _():
        y = o_ref[...] + b_ref[...].astype(jnp.float32)
        z = _apply_activation(y, activation)
        if n_act_cols is not None:
            # Fused extra_outputs: activation only on the first n_act_cols
            # (NB) columns, raw linear output on the trailing extras.
            col = (jax.lax.broadcasted_iota(jnp.int32, y.shape, 1)
                   + pl.program_id(1) * tn)
            z = jnp.where(col < n_act_cols, z, y)
        o_ref[...] = z.astype(o_ref.dtype)


def linear_act(x, w, b, activation="none", *, n_act_cols=None,
               tm_cap=512, tn_cap=512, tk_cap=1024):
    """act(x @ w + b) as one Pallas matmul; output is float32.

    When the caller passes pre-padded operands (K, N multiples of 128, M a
    multiple of 8 — as NBVAE does) no runtime padding/slicing happens at all.
    """
    M, K = x.shape
    Kw, N = w.shape
    assert K == Kw, (K, Kw)

    tm = _pick_tile(M, tm_cap, 8)
    tn = _pick_tile(N, tn_cap, 128)
    tk = _pick_tile(K, tk_cap, 128)
    Mp, Np, Kp = _round_up(M, tm), _round_up(N, tn), _round_up(K, tk)

    # v7x has two TensorCores; give the parallel axes >= 2 tiles when the
    # output is wide enough (harmless on v5e/v6e).
    if (Mp // tm) * (Np // tn) == 1 and Np // 128 >= 2:
        tn = Np // 2 if (Np // 128) % 2 == 0 else 128
    gm, gn, gk = Mp // tm, Np // tn, Kp // tk

    xp = x if (Mp == M and Kp == K) else jnp.pad(x, ((0, Mp - M), (0, Kp - K)))
    wp = w if (Kp == K and Np == N) else jnp.pad(w, ((0, Kp - K), (0, Np - N)))
    b2 = b.reshape(1, -1)
    bp = b2 if b2.shape[1] == Np else jnp.pad(b2, ((0, 0), (0, Np - b2.shape[1])))

    out = pl.pallas_call(
        functools.partial(_linear_act_kernel, activation=activation,
                          n_act_cols=n_act_cols, tn=tn),
        out_shape=jax.ShapeDtypeStruct((Mp, Np), jnp.float32),
        grid_spec=pltpu.PrefetchScalarGridSpec(
            num_scalar_prefetch=0,
            grid=(gm, gn, gk),
            in_specs=[
                pl.BlockSpec((tm, tk), lambda i, j, k: (i, k)),
                pl.BlockSpec((tk, tn), lambda i, j, k: (k, j)),
                pl.BlockSpec((1, tn), lambda i, j, k: (0, j)),
            ],
            out_specs=pl.BlockSpec((tm, tn), lambda i, j, k: (i, j)),
        ),
        compiler_params=pltpu.CompilerParams(
            dimension_semantics=("parallel", "parallel", "arbitrary"),
            vmem_limit_bytes=48 << 20,   # budget: fits v7x's 64 MiB physical
        ),
    )(xp, wp, bp)

    if Mp != M or Np != N:
        out = out[:M, :N]
    return out


# ---------------------------------------------------------------------------
# Fused inner-MLP kernel: several consecutive small layers in ONE kernel.
# Weights resident in VMEM; grid tiles only the batch.
# ---------------------------------------------------------------------------
def _fused_mlp_kernel(*refs, acts, n_act_cols_last):
    n_layers = len(acts)
    x_ref = refs[0]
    w_refs = refs[1:1 + n_layers]
    b_refs = refs[1 + n_layers:1 + 2 * n_layers]
    o_ref = refs[1 + 2 * n_layers]

    h = x_ref[...]
    for l in range(n_layers):
        y = jnp.dot(h.astype(jnp.bfloat16), w_refs[l][...].astype(jnp.bfloat16),
                    preferred_element_type=jnp.float32)
        y = y + b_refs[l][...].astype(jnp.float32)
        z = _apply_activation(y, acts[l])
        if l == n_layers - 1 and n_act_cols_last is not None:
            col = jax.lax.broadcasted_iota(jnp.int32, y.shape, 1)
            z = jnp.where(col < n_act_cols_last, z, y)
        h = z
    o_ref[...] = h.astype(o_ref.dtype)


def fused_mlp(x, layers, *, n_act_cols_last=None, tm_cap=512):
    """layers: list of (w, b, act) with chained, 128-aligned feature dims."""
    M, K0 = x.shape
    assert layers and layers[0][0].shape[0] == K0
    acts = tuple(act for (_, _, act) in layers)
    n_last = layers[-1][0].shape[1]

    tm = _pick_tile(M, tm_cap, 8)
    Mp = _round_up(M, tm)
    xp = x if Mp == M else jnp.pad(x, ((0, Mp - M), (0, 0)))

    operands = [xp]
    in_specs = [pl.BlockSpec((tm, K0), lambda i: (i, 0))]
    for (w, _, _) in layers:
        operands.append(w)
        in_specs.append(pl.BlockSpec(w.shape, lambda i: (0, 0)))
    for (_, b, _) in layers:
        b2 = b.reshape(1, -1)
        operands.append(b2)
        in_specs.append(pl.BlockSpec(b2.shape, lambda i: (0, 0)))

    out = pl.pallas_call(
        functools.partial(_fused_mlp_kernel, acts=acts,
                          n_act_cols_last=n_act_cols_last),
        out_shape=jax.ShapeDtypeStruct((Mp, n_last), jnp.float32),
        grid_spec=pltpu.PrefetchScalarGridSpec(
            num_scalar_prefetch=0,
            grid=(Mp // tm,),
            in_specs=in_specs,
            out_specs=pl.BlockSpec((tm, n_last), lambda i: (i, 0)),
        ),
        compiler_params=pltpu.CompilerParams(
            dimension_semantics=("parallel",),
            vmem_limit_bytes=48 << 20,
        ),
    )(*operands)

    if Mp != M:
        out = out[:M]
    return out


# ---------------------------------------------------------------------------
# Layer-stack runner: groups consecutive small layers into fused kernels,
# routes big layers through the tiled matmul.
# ---------------------------------------------------------------------------
_FUSE_LAYER_BYTES = 2 << 20   # a layer's padded bf16 weight must be <= 2 MiB to fuse
_FUSE_GROUP_BYTES = 8 << 20   # total resident fused weights per kernel (v7x-safe)


def _run_layer_stack(h, layers):
    """layers: list of (w, b, act, n_act_cols)."""
    groups, cur, cur_bytes = [], [], 0

    def flush():
        nonlocal cur, cur_bytes
        if cur:
            groups.append(cur)
            cur, cur_bytes = [], 0

    for lay in layers:
        w = lay[0]
        wbytes = w.shape[0] * w.shape[1] * w.dtype.itemsize
        if wbytes > _FUSE_LAYER_BYTES:
            flush()
            groups.append([lay])
        else:
            if cur_bytes + wbytes > _FUSE_GROUP_BYTES:
                flush()
            cur.append(lay)
            cur_bytes += wbytes
    flush()

    for g in groups:
        if len(g) == 1:
            w, b, act, nac = g[0]
            h = linear_act(h, w, b, act, n_act_cols=nac)
        else:
            assert all(lay[3] is None for lay in g[:-1])
            h = fused_mlp(h, [(w, b, act) for (w, b, act, _) in g],
                          n_act_cols_last=g[-1][3])
    return h


# ---------------------------------------------------------------------------
# Standalone NB activation kernel (used by NBLayer.forward)
# ---------------------------------------------------------------------------
def _activation_kernel(x_ref, o_ref, *, activation):
    y = x_ref[...].astype(jnp.float32)          # f32 epilogue math (v5e-safe)
    o_ref[...] = _apply_activation(y, activation).astype(o_ref.dtype)


def nb_activation(x, activation, *, block_rows=512, block_cols=2048):
    B, G = x.shape
    br = min(block_rows, _round_up(B, 8))
    bc = min(block_cols, _round_up(G, 128))
    Bp, Gp = _round_up(B, br), _round_up(G, bc)

    xp = x if (Bp == B and Gp == G) else jnp.pad(x, ((0, Bp - B), (0, Gp - G)))
    spec = pl.BlockSpec((br, bc), lambda i, j: (i, j))
    out = pl.pallas_call(
        functools.partial(_activation_kernel, activation=activation),
        out_shape=jax.ShapeDtypeStruct((Bp, Gp), x.dtype),
        grid=(Bp // br, Gp // bc),
        in_specs=[spec],
        out_specs=spec,
        compiler_params=pltpu.CompilerParams(
            dimension_semantics=("parallel", "parallel"),
            vmem_limit_bytes=48 << 20,
        ),
    )(xp)
    if Bp != B or Gp != G:
        out = out[:B, :G]
    return out


# ---------------------------------------------------------------------------
# NBLayer
# ---------------------------------------------------------------------------
class NBLayer:
    def __init__(self, out_dim, r_init, scaling_type="library", reduction="none"):
        self.log_r = jnp.full((1, out_dim), math.log(r_init), dtype=jnp.float32)
        if scaling_type in ["library", "total_count"]:
            self.activation = "sigmoid"
        elif scaling_type in ["mean", "median"]:
            self.activation = "softplus"
        else:
            raise ValueError(
                'Unknown scaling type specified. Please use one of: '
                '"library", "total_count", "mean", or "median".')
        self.reduction = reduction

    def forward(self, x):
        return nb_activation(x, self.activation)

    def __call__(self, x):
        return self.forward(x)

    def rescale(self, M, mhat):
        return M * mhat

    # TODO(synk): lgamma-based NB log-density stays in plain JAX f32 (lax.lgamma).
    def logprob(self, x, M, mhat):
        eps = 1e-10
        m = self.rescale(M, mhat)
        r = jnp.exp(self.log_r)
        c = 1.0 / (r + m + eps)
        return (jax.lax.lgamma(x + r) - jax.lax.lgamma(r)
                - jax.lax.lgamma(x + 1.0)
                + x * jnp.log(m * c + eps) + r * jnp.log(r * c))

    def loss(self, x, M, mhat):
        lp = -self.logprob(x, M, mhat)
        return lp if self.reduction == "none" else lp.sum()

    # TODO(synk): NBLayer.sample (torch.distributions.NegativeBinomial) has no
    # clean Pallas equivalent; omitted.


# ---------------------------------------------------------------------------
# NBVAE
# ---------------------------------------------------------------------------
class NBVAE:
    def __init__(self, dim_list, r_init=2, scaling_type="library",
                 extra_outputs=0, n_conditional_vars=0, *, key):
        self.extra_outputs = extra_outputs
        self.n_conditional_vars = n_conditional_vars
        dim_list = [dim_list[0] + n_conditional_vars] + list(dim_list[1:])
        self.latent_dim = dim_list[0] - n_conditional_vars

        enc_shapes = []
        for i in range(len(dim_list) - 1, 0, -1):
            in_d, out_d = dim_list[i], dim_list[i - 1]
            if i == len(dim_list) - 1:
                in_d = dim_list[i] + n_conditional_vars
            if i == 1:
                out_d = (dim_list[i - 1] - n_conditional_vars) * 2
            act = "relu" if i != 1 else "none"
            enc_shapes.append((in_d, out_d, act))

        dec_shapes = []
        for i in range(len(dim_list) - 1):
            act = "relu" if i != len(dim_list) - 2 else "none"
            dec_shapes.append((dim_list[i], dim_list[i + 1], act))

        n_layers = len(enc_shapes) + len(dec_shapes)
        keys = jax.random.split(key, 2 * n_layers)

        def init_layer(k_w, k_b, in_d, out_d):
            # Pad ONCE to 128-aligned shapes; store weights as bf16 (MXU
            # native, half the weight DMA), bias stays f32.
            w = jax.random.normal(k_w, (in_d, out_d), jnp.float32) / math.sqrt(in_d)
            b = 0.01 * jax.random.normal(k_b, (out_d,), jnp.float32)
            kp, np_ = _round_up(in_d, 128), _round_up(out_d, 128)
            wp = _pad2(w, kp, np_).astype(jnp.bfloat16)
            bp = _pad2(b.reshape(1, -1), 1, np_)
            return wp, bp

        self.enc_params, self.dec_params = [], []
        idx = 0
        for in_d, out_d, act in enc_shapes:
            w, b = init_layer(keys[idx], keys[idx + 1], in_d, out_d)
            idx += 2
            self.enc_params.append((w, b, act, in_d, out_d))
        for in_d, out_d, act in dec_shapes:
            w, b = init_layer(keys[idx], keys[idx + 1], in_d, out_d)
            idx += 2
            self.dec_params.append((w, b, act, in_d, out_d))

        self.nb = NBLayer(dim_list[-1] - extra_outputs, r_init=r_init,
                          scaling_type=scaling_type)

    # --- forward pass pieces -------------------------------------------------
    def encode(self, x, conditional_vars=None):
        if conditional_vars is not None:
            x = jnp.concatenate([x, conditional_vars], axis=-1)
        B = x.shape[0]
        # Pad once (batch -> 8, features -> first layer's padded K); stay
        # padded through the whole encoder.
        h = _pad2(x, _round_up(B, 8), self.enc_params[0][0].shape[0])
        layers = [(w, b, act, None) for (w, b, act, _, _) in self.enc_params]
        h = _run_layer_stack(h, layers)
        h = h[:B, :2 * self.latent_dim]
        mu, log_var = jnp.split(h, 2, axis=-1)
        return mu, log_var

    def reparameterize(self, mu, log_var, eps):
        # TODO(synk): RNG stays in plain JAX (jax.random), not in the kernel.
        std = jnp.exp(0.5 * log_var)
        return mu + eps * std

    def decode(self, z, conditional_vars=None):
        if conditional_vars is not None:
            z = jnp.concatenate([z, conditional_vars], axis=-1)
        B = z.shape[0]
        h = _pad2(z, _round_up(B, 8), self.dec_params[0][0].shape[0])
        layers = []
        n_dec = len(self.dec_params)
        for i, (w, b, act, in_d, out_d) in enumerate(self.dec_params):
            if i == n_dec - 1:
                # NB activation (+ extra_outputs passthrough) fused into the
                # final matmul epilogue.
                nac = out_d - self.extra_outputs if self.extra_outputs else None
                layers.append((w, b, self.nb.activation, nac))
            else:
                layers.append((w, b, act, None))
        h = _run_layer_stack(h, layers)
        return h[:B, :self.dec_params[-1][4]]

    def forward(self, x, conditional_vars=None, *, key):
        mu, log_var = self.encode(x, conditional_vars)
        eps = jax.random.normal(key, mu.shape, mu.dtype)
        z = self.reparameterize(mu, log_var, eps)
        x_hat = self.decode(z, conditional_vars)
        return x_hat, mu, log_var, eps

    def loss(self, x, x_hat, mu, log_var, scaling, deg_list=None, deg_weight=20):
        # Plain JAX (lgamma); not part of the Pallas hot path.
        recon = self.nb.loss(x, scaling, x_hat)
        if deg_list is not None:
            recon = recon.at[:, deg_list].multiply(deg_weight)
        recon = recon.sum()
        kl = -0.5 * jnp.sum(1 + log_var - mu ** 2 - jnp.exp(log_var))
        return recon, kl


# ---------------------------------------------------------------------------
# Plain-JAX reference mirroring the kernels' bf16-operand / f32-accum math
# ---------------------------------------------------------------------------
def reference_forward(model, x, eps, conditional_vars=None):
    def lin(h, w, b, in_d, out_d):
        return (jnp.dot(h.astype(jnp.bfloat16), w[:in_d, :out_d],
                        preferred_element_type=jnp.float32) + b[0, :out_d])

    h = x if conditional_vars is None else jnp.concatenate([x, conditional_vars], -1)
    for (w, b, act, in_d, out_d) in model.enc_params:
        h = lin(h, w, b, in_d, out_d)
        if act == "relu":
            h = jnp.maximum(h, 0.0)
    mu, log_var = jnp.split(h, 2, axis=-1)
    z = mu + eps * jnp.exp(0.5 * log_var)
    h = z if conditional_vars is None else jnp.concatenate([z, conditional_vars], -1)
    n = len(model.dec_params)
    act_fn = jax.nn.sigmoid if model.nb.activation == "sigmoid" else jax.nn.softplus
    for i, (w, b, act, in_d, out_d) in enumerate(model.dec_params):
        h = lin(h, w, b, in_d, out_d)
        if i == n - 1:
            if model.extra_outputs:
                h = jnp.concatenate([act_fn(h[:, :-model.extra_outputs]),
                                     h[:, -model.extra_outputs:]], axis=-1)
            else:
                h = act_fn(h)
        elif act == "relu":
            h = jnp.maximum(h, 0.0)
    return h, mu, log_var


# ---------------------------------------------------------------------------
# Demo / smoke test
# ---------------------------------------------------------------------------
if __name__ == "__main__":
    key = jax.random.PRNGKey(0)
    (k_model, k_model2, k_data, k_eps, k_eps2,
     k_act, k_a, k_w, k_b) = jax.random.split(key, 9)

    # dim_list = [latent, hidden, genes]; batch deliberately not a multiple of
    # 8 to exercise the batch-padding path.
    dim_list = [16, 64, 256]
    batch = 6

    # --- full NBVAE forward (sigmoid NB head), fused-MLP path ---------------
    model = NBVAE(dim_list, r_init=2, scaling_type="library", key=k_model)
    x = jax.random.normal(k_data, (batch, dim_list[-1]), dtype=jnp.float32)

    x_hat, mu, log_var, eps = model.forward(x, key=k_eps)
    x_hat = jax.block_until_ready(x_hat)
    x_hat_ref, mu_ref, lv_ref = reference_forward(model, x, eps)
    assert x_hat.shape == (batch, dim_list[-1])
    assert jnp.allclose(mu, mu_ref, atol=1e-2, rtol=1e-2), "mu mismatch"
    assert jnp.allclose(log_var, lv_ref, atol=1e-2, rtol=1e-2), "log_var mismatch"
    assert jnp.allclose(x_hat, x_hat_ref, atol=1e-2, rtol=1e-2), "x_hat mismatch"

    # --- extra_outputs path (masked activation fused in the epilogue) -------
    model2 = NBVAE(dim_list, r_init=2, scaling_type="mean", extra_outputs=3,
                   key=k_model2)
    x_hat2, mu2, lv2, eps2 = model2.forward(x, key=k_eps2)
    x_hat2 = jax.block_until_ready(x_hat2)
    ref2, _, _ = reference_forward(model2, x, eps2)
    assert jnp.allclose(x_hat2, ref2, atol=1e-2, rtol=1e-2), "extra_outputs mismatch"

    # --- standalone tiled matmul kernel (non-aligned shapes / padding path) --
    a = jax.random.normal(k_a, (13, 200), jnp.float32)
    wl = 0.1 * jax.random.normal(k_w, (200, 300), jnp.float32)
    bl = 0.1 * jax.random.normal(k_b, (300,), jnp.float32)
    y = jax.block_until_ready(linear_act(a, wl, bl, "relu"))
    y_ref = jnp.maximum(
        jnp.dot(a.astype(jnp.bfloat16), wl.astype(jnp.bfloat16),
                preferred_element_type=jnp.float32) + bl, 0.0)
    assert jnp.allclose(y, y_ref, atol=1e-2, rtol=1e-2), "linear_act mismatch"

    # --- standalone NBLayer activation kernel --------------------------------
    x_act = 3.0 * jax.random.normal(k_act, (batch, dim_list[-1]), jnp.float32)
    layer_sig = NBLayer(dim_list[-1], r_init=2.0, scaling_type="library")
    y_sig = jax.block_until_ready(layer_sig(x_act))
    assert jnp.allclose(y_sig, jax.nn.sigmoid(x_act), atol=1e-2), "sigmoid mismatch"

    layer_sp = NBLayer(dim_list[-1], r_init=2.0, scaling_type="mean")
    y_sp = jax.block_until_ready(layer_sp(x_act))
    assert jnp.allclose(y_sp, jax.nn.softplus(x_act), atol=1e-2), "softplus mismatch"

    print("KERNEL_OK")
</pallas_src>

<mosaic_0001>
module attributes {stable_mosaic.version = 11 : i64} {
  func.func @_fused_mlp_kernel(%arg0: i32, %arg1: memref<8x256xf32, #tpu.memory_space<vmem>>, %arg2: memref<256x128xbf16, #tpu.memory_space<vmem>>, %arg3: memref<128x128xbf16, #tpu.memory_space<vmem>>, %arg4: memref<1x128xf32, #tpu.memory_space<vmem>>, %arg5: memref<1x128xf32, #tpu.memory_space<vmem>>, %arg6: memref<8x128xf32, #tpu.memory_space<vmem>>) attributes {dimension_semantics = [#tpu.dimension_semantics<parallel>], iteration_bounds = array<i64: 1>, scalar_prefetch = 0 : i64, scratch_operands = 0 : i64, tpu.core_type = #tpu.core_type<tc>, window_params = [{transform_indices = @transform_0, window_bounds = array<i64: 8, 256>}, {pipeline_mode = #tpu.pipeline_mode<synchronous>, transform_indices = @transform_1, window_bounds = array<i64: 256, 128>}, {pipeline_mode = #tpu.pipeline_mode<synchronous>, transform_indices = @transform_2, window_bounds = array<i64: 128, 128>}, {pipeline_mode = #tpu.pipeline_mode<synchronous>, transform_indices = @transform_3, window_bounds = array<i64: 1, 128>}, {pipeline_mode = #tpu.pipeline_mode<synchronous>, transform_indices = @transform_4, window_bounds = array<i64: 1, 128>}, {transform_indices = @transform_5, window_bounds = array<i64: 8, 128>}]} {
    %c0 = arith.constant 0 : index
    %c0_0 = arith.constant 0 : index
    %0 = vector.load %arg1[%c0, %c0_0] : memref<8x256xf32, #tpu.memory_space<vmem>>, vector<8x256xf32>
    %1 = arith.truncf %0 : vector<8x256xf32> to vector<8x256xbf16>
    %c0_1 = arith.constant 0 : index
    %c0_2 = arith.constant 0 : index
    %2 = vector.load %arg2[%c0_1, %c0_2] : memref<256x128xbf16, #tpu.memory_space<vmem>>, vector<256x128xbf16>
    %cst = arith.constant dense<0.000000e+00> : vector<8x128xf32>
    %3 = tpu.matmul %1, %2, %cst {dimension_numbers = #tpu.dot_dimension_numbers<[1], [0], [0], [1], [0, 0, 1, 1], [], []>} : vector<8x256xbf16>, vector<256x128xbf16>, vector<8x128xf32> -> vector<8x128xf32>
    %c0_3 = arith.constant 0 : index
    %c0_4 = arith.constant 0 : index
    %4 = vector.load %arg4[%c0_3, %c0_4] : memref<1x128xf32, #tpu.memory_space<vmem>>, vector<1x128xf32>
    %5 = vector.broadcast %4 : vector<1x128xf32> to vector<8x128xf32>
    %6 = arith.addf %3, %5 : vector<8x128xf32>
    %cst_5 = arith.constant 0.000000e+00 : f32
    %7 = vector.broadcast %cst_5 : f32 to vector<8x128xf32>
    %8 = arith.maximumf %6, %7 : vector<8x128xf32>
    %9 = arith.truncf %8 : vector<8x128xf32> to vector<8x128xbf16>
    %c0_6 = arith.constant 0 : index
    %c0_7 = arith.constant 0 : index
    %10 = vector.load %arg3[%c0_6, %c0_7] : memref<128x128xbf16, #tpu.memory_space<vmem>>, vector<128x128xbf16>
    %cst_8 = arith.constant dense<0.000000e+00> : vector<8x128xf32>
    %11 = tpu.matmul %9, %10, %cst_8 {dimension_numbers = #tpu.dot_dimension_numbers<[1], [0], [0], [1], [0, 0, 1, 1], [], []>} : vector<8x128xbf16>, vector<128x128xbf16>, vector<8x128xf32> -> vector<8x128xf32>
    %c0_9 = arith.constant 0 : index
    %c0_10 = arith.constant 0 : index
    %12 = vector.load %arg5[%c0_9, %c0_10] : memref<1x128xf32, #tpu.memory_space<vmem>>, vector<1x128xf32>
    %13 = vector.broadcast %12 : vector<1x128xf32> to vector<8x128xf32>
    %14 = arith.addf %11, %13 : vector<8x128xf32>
    %c0_11 = arith.constant 0 : index
    %c0_12 = arith.constant 0 : index
    %15 = vector.load %arg6[%c0_11, %c0_12] : memref<8x128xf32, #tpu.memory_space<vmem>>, vector<8x128xf32>
    tpu.vector_store %arg6[%c0_11, %c0_12], %14 {strides = array<i32>} : memref<8x128xf32, #tpu.memory_space<vmem>>, vector<8x128xf32>,
    return
  }
  func.func @transform_0(%arg0: i32) -> (i32, i32) {
    %c0_i32 = arith.constant 0 : i32
    %c0_i32_0 = arith.constant 0 : i32
    return %arg0, %c0_i32 : i32, i32
  }
  func.func @transform_1(%arg0: i32) -> (i32, i32) {
    %c0_i32 = arith.constant 0 : i32
    %c0_i32_0 = arith.constant 0 : i32
    %c0_i32_1 = arith.constant 0 : i32
    return %c0_i32, %c0_i32_0 : i32, i32
  }
  func.func @transform_2(%arg0: i32) -> (i32, i32) {
    %c0_i32 = arith.constant 0 : i32
    %c0_i32_0 = arith.constant 0 : i32
    %c0_i32_1 = arith.constant 0 : i32
    return %c0_i32, %c0_i32_0 : i32, i32
  }
  func.func @transform_3(%arg0: i32) -> (i32, i32) {
    %c0_i32 = arith.constant 0 : i32
    %c0_i32_0 = arith.constant 0 : i32
    %c0_i32_1 = arith.constant 0 : i32
    return %c0_i32, %c0_i32_0 : i32, i32
  }
  func.func @transform_4(%arg0: i32) -> (i32, i32) {
    %c0_i32 = arith.constant 0 : i32
    %c0_i32_0 = arith.constant 0 : i32
    %c0_i32_1 = arith.constant 0 : i32
    return %c0_i32, %c0_i32_0 : i32, i32
  }
  func.func @transform_5(%arg0: i32) -> (i32, i32) {
    %c0_i32 = arith.constant 0 : i32
    %c0_i32_0 = arith.constant 0 : i32
    return %arg0, %c0_i32 : i32, i32
  }
}

</mosaic_0001>

<llo_original>
// kernel: tpu_custom_call.1
$region0: #{tpu_custom_call.1}
  #allocation0 [shape = 'u32[]', space=smem, size = 0x4, offset = 0x4, fixed_abs, tag = 'smem constant byte address 0x4 - core index']
  #allocation1 [shape = 'u32[144,128]{1,0:T(1,128)}', space=vmem, size = 0x12000, scoped, tag = 'internal scratch']
  %s0 = inlined_call_operand.hbm [shape: f32[8,256], index: 0, kind: input, shape index: {}]
  %s1 = inlined_call_operand.hbm [shape: bf16[256,128], index: 1, kind: input, shape index: {}]
  %s2 = inlined_call_operand.hbm [shape: bf16[128,128], index: 2, kind: input, shape index: {}]
  %s3 = inlined_call_operand.vmem [shape: f32[1,128], index: 3, kind: input, shape index: {}]
  %s4 = inlined_call_operand.vmem [shape: f32[1,128], index: 4, kind: input, shape index: {}]
  %s5 = inlined_call_operand.hbm [shape: f32[8,128], index: 5, kind: output, shape index: {}]
  %s6 = sld [smem:[#allocation0]]
  $region42: #{tpu_custom_call.1} parent=0
    _
  %s8 = ssub.s32 1, %s6
  %s9 = scalar_select 0, %s8, %s6
  $region1: #{tpu_custom_call.1} parent=0
    #allocation2 [shape = 'u8[8192]{0}', space=vmem, size = 0x2000, scoped, tag = 'input window, operand 0, single buffered']
    #allocation3 [shape = 's32[1]{0}', space=sflag, size = 0x4, scoped, tag = 'scoped memory for tpu_custom_call.1']
    #allocation4 [shape = 's32[1]{0}', space=sflag, size = 0x4, scoped, tag = 'scoped memory for tpu_custom_call.1']
    #allocation5 [shape = 'u8[65536]{0}', space=vmem, size = 0x10000, scoped, tag = 'input window, operand 1, single buffered']
    #allocation6 [shape = 's32[1]{0}', space=sflag, size = 0x4, scoped, tag = 'scoped memory for tpu_custom_call.1']
    #allocation7 [shape = 'u8[32768]{0}', space=vmem, size = 0x8000, scoped, tag = 'input window, operand 2, single buffered']
    #allocation8 [shape = 'u8[4096]{0}', space=vmem, size = 0x1000, scoped, tag = 'output window, operand 0, single buffered']
    %10 = vsyncpa [#allocation3], 0
    %11 = vsyncpa [#allocation6], 0
    %12 = vsyncpa [#allocation4], 0
    // Predicated region
    $region2: #{tpu_custom_call.1} parent=1 // pred_check
      _
    $region3: #{tpu_custom_call.1} parent=1 // pred_check_branch
      %14 = sbr.rel (0) target = $region5
    $region4: #{tpu_custom_call.1} parent=1 // pred_region
      %s16 = ssub.s32 256, 256
      %17 = vsyncadd [#allocation3], %s16
      %s19 = sshll.u32 [#allocation2], 4
      %s20 = int_to_ptr.vmem [resolvable:$true] %s19
      %22 = dma.hbm_to_vmem [thread:$0]  %s0, 256, %s20, [#allocation3]
    $region5: #{tpu_custom_call.1} parent=1 // pred_fallthru
      _
    // Predicated region
    $region6: #{tpu_custom_call.1} parent=1 // pred_check
      _
    $region7: #{tpu_custom_call.1} parent=1 // pred_check_branch
      %24 = sbr.rel (0) target = $region9
    $region8: #{tpu_custom_call.1} parent=1 // pred_region
      %s26 = ssub.s32 2048, 2048
      %27 = vsyncadd [#allocation6], %s26
      %s28 = sshll.u32 [#allocation5], 4
      %s29 = int_to_ptr.vmem [resolvable:$true] %s28
      %34 = dma.hbm_to_vmem [thread:$0]  %s1, 2048, %s29, [#allocation6], 64, 64, 4
    $region9: #{tpu_custom_call.1} parent=1 // pred_fallthru
      _
    // Predicated region
    $region10: #{tpu_custom_call.1} parent=1 // pred_check
      _
    $region11: #{tpu_custom_call.1} parent=1 // pred_check_branch
      %36 = sbr.rel (0) target = $region13
    $region12: #{tpu_custom_call.1} parent=1 // pred_region
      %s38 = ssub.s32 1024, 1024
      %39 = vsyncadd [#allocation6], %s38
      %s40 = sshll.u32 [#allocation7], 4
      %s41 = int_to_ptr.vmem [resolvable:$true] %s40
      %46 = dma.hbm_to_vmem [thread:$0]  %s2, 1024, %s41, [#allocation6], 64, 64, 4
    $region13: #{tpu_custom_call.1} parent=1 // pred_fallthru
      _
    // Predicated region
    $region14: #{tpu_custom_call.1} parent=1 // pred_check
      _
    $region15: #{tpu_custom_call.1} parent=1 // pred_check_branch
      %48 = sbr.rel (0) target = $region17
    $region16: #{tpu_custom_call.1} parent=1 // pred_region
      _
    $region17: #{tpu_custom_call.1} parent=1 // pred_fallthru
      _
    // Predicated region
    $region18: #{tpu_custom_call.1} parent=1 // pred_check
      _
    $region19: #{tpu_custom_call.1} parent=1 // pred_check_branch
      %50 = sbr.rel (0) target = $region21
    $region20: #{tpu_custom_call.1} parent=1 // pred_region
      _
    $region21: #{tpu_custom_call.1} parent=1 // pred_fallthru
      _
    // Predicated region
    $region22: #{tpu_custom_call.1} parent=1 // pred_check
      _
    $region23: #{tpu_custom_call.1} parent=1 // pred_check_branch
      %52 = sbr.rel (0) target = $region25
    $region24: #{tpu_custom_call.1} parent=1 // pred_region
      %53 = dma.done [#allocation3], 256
    $region25: #{tpu_custom_call.1} parent=1 // pred_fallthru
      _
    // Predicated region
    $region26: #{tpu_custom_call.1} parent=1 // pred_check
      _
    $region27: #{tpu_custom_call.1} parent=1 // pred_check_branch
      %55 = sbr.rel (0) target = $region29
    $region28: #{tpu_custom_call.1} parent=1 // pred_region
      %56 = dma.done [#allocation6], 2048
    $region29: #{tpu_custom_call.1} parent=1 // pred_fallthru
      _
    // Predicated region
    $region30: #{tpu_custom_call.1} parent=1 // pred_check
      _
    $region31: #{tpu_custom_call.1} parent=1 // pred_check_branch
      %58 = sbr.rel (0) target = $region33
    $region32: #{tpu_custom_call.1} parent=1 // pred_region
      %59 = dma.done [#allocation6], 1024
    $region33: #{tpu_custom_call.1} parent=1 // pred_fallthru
      _
    %v61 = vld [vmem:[#allocation2] sm:$0xff]
    %v62 = vld [vmem:[#allocation2 + $0x8] sm:$0xff]
    %v63 = vpack.c.bf16 %v61, %v61
    %v64 = vpack.c.bf16 %v62, %v62
    %v65 = vld [vmem:[#allocation5] sm:$0xf]
    %v66 = vld [vmem:[#allocation5 + $0x4] sm:$0xf]
    %v67 = vld [vmem:[#allocation5 + $0x8] sm:$0xf]
    %v68 = vld [vmem:[#allocation5 + $0xc] sm:$0xf]
    %v69 = vld [vmem:[#allocation5 + $0x10] sm:$0xf]
    %v70 = vld [vmem:[#allocation5 + $0x14] sm:$0xf]
    %v71 = vld [vmem:[#allocation5 + $0x18] sm:$0xf]
    %v72 = vld [vmem:[#allocation5 + $0x1c] sm:$0xf]
    %v73 = vld [vmem:[#allocation5 + $0x20] sm:$0xf]
    %v74 = vld [vmem:[#allocation5 + $0x24] sm:$0xf]
    %v75 = vld [vmem:[#allocation5 + $0x28] sm:$0xf]
    %v76 = vld [vmem:[#allocation5 + $0x2c] sm:$0xf]
    %v77 = vld [vmem:[#allocation5 + $0x30] sm:$0xf]
    %v78 = vld [vmem:[#allocation5 + $0x34] sm:$0xf]
    %v79 = vld [vmem:[#allocation5 + $0x38] sm:$0xf]
    %v80 = vld [vmem:[#allocation5 + $0x3c] sm:$0xf]
    %v81 = vld [vmem:[#allocation5 + $0x40] sm:$0xf]
    %v82 = vld [vmem:[#allocation5 + $0x44] sm:$0xf]
    %v83 = vld [vmem:[#allocation5 + $0x48] sm:$0xf]
    %v84 = vld [vmem:[#allocation5 + $0x4c] sm:$0xf]
    %v85 = vld [vmem:[#allocation5 + $0x50] sm:$0xf]
    %v86 = vld [vmem:[#allocation5 + $0x54] sm:$0xf]
    %v87 = vld [vmem:[#allocation5 + $0x58] sm:$0xf]
    %v88 = vld [vmem:[#allocation5 + $0x5c] sm:$0xf]
    %v89 = vld [vmem:[#allocation5 + $0x60] sm:$0xf]
    %v90 = vld [vmem:[#allocation5 + $0x64] sm:$0xf]
    %v91 = vld [vmem:[#allocation5 + $0x68] sm:$0xf]
    %v92 = vld [vmem:[#allocation5 + $0x6c] sm:$0xf]
    %v93 = vld [vmem:[#allocation5 + $0x70] sm:$0xf]
    %v94 = vld [vmem:[#allocation5 + $0x74] sm:$0xf]
    %v95 = vld [vmem:[#allocation5 + $0x78] sm:$0xf]
    %v96 = vld [vmem:[#allocation5 + $0x7c] sm:$0xf]
    %v97 = vld [vmem:[%s3] sm:$0x1]
    %v99 = vlaneseq
    %v100 = vshrl.u32 %v99, 7
    %v101 = vsub.s32 0, %v100
    %v102 = vrot.slane %v97, %v101
    %v136 = vunpack.c.l.b16 %v65
    %v137 = vunpack.c.l.b16 %v66
    %v138 = vunpack.c.l.b16 %v67
    %v139 = vunpack.c.l.b16 %v68
    %v140 = vunpack.c.l.b16 %v69
    %v141 = vunpack.c.l.b16 %v70
    %v142 = vunpack.c.l.b16 %v71
    %v143 = vunpack.c.l.b16 %v72
    %v144 = vunpack.c.l.b16 %v73
    %v145 = vunpack.c.l.b16 %v74
    %v146 = vunpack.c.l.b16 %v75
    %v147 = vunpack.c.l.b16 %v76
    %v148 = vunpack.c.l.b16 %v77
    %v149 = vunpack.c.l.b16 %v78
    %v150 = vunpack.c.l.b16 %v79
    %v151 = vunpack.c.l.b16 %v80
    %v152 = vunpack.c.l.b16 %v81
    %v153 = vunpack.c.l.b16 %v82
    %v154 = vunpack.c.l.b16 %v83
    %v155 = vunpack.c.l.b16 %v84
    %v156 = vunpack.c.l.b16 %v85
    %v157 = vunpack.c.l.b16 %v86
    %v158 = vunpack.c.l.b16 %v87
    %v159 = vunpack.c.l.b16 %v88
    %v160 = vunpack.c.l.b16 %v89
    %v161 = vunpack.c.l.b16 %v90
    %v162 = vunpack.c.l.b16 %v91
    %v163 = vunpack.c.l.b16 %v92
    %v164 = vunpack.c.l.b16 %v93
    %v165 = vunpack.c.l.b16 %v94
    %v166 = vunpack.c.l.b16 %v95
    %v167 = vunpack.c.l.b16 %v96
    %v168 = vpack.c.b16 %v137, %v136
    %v169 = vpack.c.b16 %v139, %v138
    %v170 = vpack.c.b16 %v141, %v140
    %v171 = vpack.c.b16 %v143, %v142
    %v172 = vpack.c.b16 %v145, %v144
    %v173 = vpack.c.b16 %v147, %v146
    %v174 = vpack.c.b16 %v149, %v148
    %v175 = vpack.c.b16 %v151, %v150
    %v176 = vpack.c.b16 %v153, %v152
    %v177 = vpack.c.b16 %v155, %v154
    %v178 = vpack.c.b16 %v157, %v156
    %v179 = vpack.c.b16 %v159, %v158
    %v180 = vpack.c.b16 %v161, %v160
    %v181 = vpack.c.b16 %v163, %v162
    %v182 = vpack.c.b16 %v165, %v164
    %v183 = vpack.c.b16 %v167, %v166
    %200 = vmatprep.subr.bf16.mxu0 0
    %201 = vmatpush1.bf16.msra.mxu0 %v168
    %202 = vmatprep.subr.bf16.mxu0 0
    %203 = vmatpush1.bf16.msra.mxu0 %v169
    %204 = vmatprep.subr.bf16.mxu0 0
    %205 = vmatpush1.bf16.msra.mxu0 %v170
    %206 = vmatprep.subr.bf16.mxu0 0
    %207 = vmatpush1.bf16.msra.mxu0 %v171
    %208 = vmatprep.subr.bf16.mxu0 0
    %209 = vmatpush1.bf16.msra.mxu0 %v172
    %210 = vmatprep.subr.bf16.mxu0 0
    %211 = vmatpush1.bf16.msra.mxu0 %v173
    %212 = vmatprep.subr.bf16.mxu0 0
    %213 = vmatpush1.bf16.msra.mxu0 %v174
    %214 = vmatprep.subr.bf16.mxu0 0
    %215 = vmatpush1.bf16.msra.mxu0 %v175
    %216 = vmatprep.subr.bf16.mxu0 0
    %217 = vmatpush1.bf16.msra.mxu0 %v176
    %218 = vmatprep.subr.bf16.mxu0 0
    %219 = vmatpush1.bf16.msra.mxu0 %v177
    %220 = vmatprep.subr.bf16.mxu0 0
    %221 = vmatpush1.bf16.msra.mxu0 %v178
    %222 = vmatprep.subr.bf16.mxu0 0
    %223 = vmatpush1.bf16.msra.mxu0 %v179
    %224 = vmatprep.subr.bf16.mxu0 0
    %225 = vmatpush1.bf16.msra.mxu0 %v180
    %226 = vmatprep.subr.bf16.mxu0 0
    %227 = vmatpush1.bf16.msra.mxu0 %v181
    %228 = vmatprep.subr.bf16.mxu0 0
    %229 = vmatpush1.bf16.msra.mxu0 %v182
    %230 = vmatprep.subr.bf16.mxu0 0
    %231 = vmatpush1.bf16.msra.mxu0 %v183
    %232 = vmatprep.mubr.bf16.mxu0 %v64
    %233 = vmatmul.mubr.bf16.gmra.mrb[0].mxu0 %v63
    %v234 = vpop.f32.mrb[0].mxu0
    %v235 = vadd.f32 %v102, %v234
    %v236 = vpop.f32.mrb[0].mxu0
    %v237 = vpop.f32.mrb[0].mxu0
    %v238 = vpop.f32.mrb[0].mxu0
    %239 = vdwg.mxu0
    %v240 = vmax.f32 %v235, 0.0
    %v241 = vpack.c.bf16 %v240, %v240
    %v242 = vld [vmem:[#allocation7] sm:$0xf]
    %v243 = vld [vmem:[#allocation7 + $0x4] sm:$0xf]
    %v244 = vld [vmem:[#allocation7 + $0x8] sm:$0xf]
    %v245 = vld [vmem:[#allocation7 + $0xc] sm:$0xf]
    %v246 = vld [vmem:[#allocation7 + $0x10] sm:$0xf]
    %v247 = vld [vmem:[#allocation7 + $0x14] sm:$0xf]
    %v248 = vld [vmem:[#allocation7 + $0x18] sm:$0xf]
    %v249 = vld [vmem:[#allocation7 + $0x1c] sm:$0xf]
    %v250 = vld [vmem:[#allocation7 + $0x20] sm:$0xf]
    %v251 = vld [vmem:[#allocation7 + $0x24] sm:$0xf]
    %v252 = vld [vmem:[#allocation7 + $0x28] sm:$0xf]
    %v253 = vld [vmem:[#allocation7 + $0x2c] sm:$0xf]
    %v254 = vld [vmem:[#allocation7 + $0x30] sm:$0xf]
    %v255 = vld [vmem:[#allocation7 + $0x34] sm:$0xf]
    %v256 = vld [vmem:[#allocation7 + $0x38] sm:$0xf]
    %v257 = vld [vmem:[#allocation7 + $0x3c] sm:$0xf]
    %v258 = vld [vmem:[%s4] sm:$0x1]
    %v260 = vlaneseq
    %v261 = vshrl.u32 %v260, 7
    %v262 = vsub.s32 0, %v261
    %v263 = vrot.slane %v258, %v262
    %v281 = vunpack.c.l.b16 %v242
    %v282 = vunpack.c.l.b16 %v243
    %v283 = vunpack.c.l.b16 %v244
    %v284 = vunpack.c.l.b16 %v245
    %v285 = vunpack.c.l.b16 %v246
    %v286 = vunpack.c.l.b16 %v247
    %v287 = vunpack.c.l.b16 %v248
    %v288 = vunpack.c.l.b16 %v249
    %v289 = vunpack.c.l.b16 %v250
    %v290 = vunpack.c.l.b16 %v251
    %v291 = vunpack.c.l.b16 %v252
    %v292 = vunpack.c.l.b16 %v253
    %v293 = vunpack.c.l.b16 %v254
    %v294 = vunpack.c.l.b16 %v255
    %v295 = vunpack.c.l.b16 %v256
    %v296 = vunpack.c.l.b16 %v257
    %v297 = vpack.c.b16 %v282, %v281
    %v298 = vpack.c.b16 %v284, %v283
    %v299 = vpack.c.b16 %v286, %v285
    %v300 = vpack.c.b16 %v288, %v287
    %v301 = vpack.c.b16 %v290, %v289
    %v302 = vpack.c.b16 %v292, %v291
    %v303 = vpack.c.b16 %v294, %v293
    %v304 = vpack.c.b16 %v296, %v295
    %313 = vmatprep.subr.bf16.mxu0 0
    %314 = vmatpush1.bf16.msra.mxu0 %v297
    %315 = vmatprep.subr.bf16.mxu0 0
    %316 = vmatpush1.bf16.msra.mxu0 %v298
    %317 = vmatprep.subr.bf16.mxu0 0
    %318 = vmatpush1.bf16.msra.mxu0 %v299
    %319 = vmatprep.subr.bf16.mxu0 0
    %320 = vmatpush1.bf16.msra.mxu0 %v300
    %321 = vmatprep.subr.bf16.mxu0 0
    %322 = vmatpush1.bf16.msra.mxu0 %v301
    %323 = vmatprep.subr.bf16.mxu0 0
    %324 = vmatpush1.bf16.msra.mxu0 %v302
    %325 = vmatprep.subr.bf16.mxu0 0
    %326 = vmatpush1.bf16.msra.mxu0 %v303
    %327 = vmatprep.subr.bf16.mxu0 0
    %328 = vmatpush1.bf16.msra.mxu0 %v304
    %329 = vmatprep.subr.bf16.mxu0 0
    %330 = vmatpush1.bf16.msra.mxu0 0
    %331 = vmatprep.subr.bf16.mxu0 0
    %332 = vmatpush1.bf16.msra.mxu0 0
    %333 = vmatprep.subr.bf16.mxu0 0
    %334 = vmatpush1.bf16.msra.mxu0 0
    %335 = vmatprep.subr.bf16.mxu0 0
    %336 = vmatpush1.bf16.msra.mxu0 0
    %337 = vmatprep.subr.bf16.mxu0 0
    %338 = vmatpush1.bf16.msra.mxu0 0
    %339 = vmatprep.subr.bf16.mxu0 0
    %340 = vmatpush1.bf16.msra.mxu0 0
    %341 = vmatprep.subr.bf16.mxu0 0
    %342 = vmatpush1.bf16.msra.mxu0 0
    %343 = vmatprep.subr.bf16.mxu0 0
    %344 = vmatpush1.bf16.msra.mxu0 0
    %345 = vmatprep.mubr.bf16.mxu0 0
    %346 = vmatmul.mubr.bf16.gmra.mrb[0].mxu0 %v241
    %v347 = vpop.f32.mrb[0].mxu0
    %v348 = vadd.f32 %v263, %v347
    %v349 = vpop.f32.mrb[0].mxu0
    %v350 = vpop.f32.mrb[0].mxu0
    %v351 = vpop.f32.mrb[0].mxu0
    %352 = vdwg.mxu0
    %353 = vst [vmem:[#allocation8] sm:$0xff] %v348
    // Predicated region
    $region34: #{tpu_custom_call.1} parent=1 // pred_check
      _
    $region35: #{tpu_custom_call.1} parent=1 // pred_check_branch
      %355 = sbr.rel (0) target = $region37
    $region36: #{tpu_custom_call.1} parent=1 // pred_region
      %s357 = ssub.s32 128, 128
      %358 = vsyncadd [#allocation4], %s357
      %s360 = sshll.u32 [#allocation8], 4
      %s361 = int_to_ptr.vmem [resolvable:$true] %s360
      %363 = dma.vmem_to_hbm [thread:$0]  %s361, 128, %s5, [#allocation4]
    $region37: #{tpu_custom_call.1} parent=1 // pred_fallthru
      _
    // Predicated region
    $region38: #{tpu_custom_call.1} parent=1 // pred_check
      _
    $region39: #{tpu_custom_call.1} parent=1 // pred_check_branch
      %365 = sbr.rel (0) target = $region41
    $region40: #{tpu_custom_call.1} parent=1 // pred_region
      %366 = dma.done [#allocation4], 128
    $region41: #{tpu_custom_call.1} parent=1 // pred_fallthru
      _
    %367 = vsyncpa [#allocation3], 1
    %368 = vsyncpa [#allocation6], 1
    %369 = vsyncpa [#allocation4], 1

</llo_original>
